<compile_context>
chip_gen: v7x
topology: tpu7x:2x2x1
jax: 0.10.0
libtpu: 0.0.40
codegen_flags: <defaults>
</compile_context>

<pallas_src>
import functools

import jax
import jax.numpy as jnp
from jax.experimental import pallas as pl
from jax.experimental.pallas import tpu as pltpu

_MAX_TILE_C = 2048            # class-chunk width when C is tiled (multiple of 128)
_LANE_PAD_ROW_BYTES = 4096    # (tile_n, 1) scratch / target blocks pad to 128 lanes


def _vmem_budgets():
    """(vmem_limit_bytes, per-step working-set budget) — generation aware."""
    cap = None
    try:
        cap = getattr(pltpu.get_tpu_info(), "vmem_capacity_bytes", None)
    except Exception:
        cap = None
    if cap is None:
        cap = 64 * 1024 * 1024                       # assume the smallest (v7x)
    if cap >= 128 * 1024 * 1024:                     # v5e / v6e: use the headroom
        return 96 * 1024 * 1024, 72 * 1024 * 1024
    return 48 * 1024 * 1024, 36 * 1024 * 1024        # v7x (64 MiB physical)


def _pick_tiles(n, c, streamed_bytes, f32_temps, min_itemsize, tile_n, tile_c):
    """Size tiles by bytes: fit dbuf'd inputs + f32 temporaries in the budget."""
    vmem_limit, budget = _vmem_budgets()
    if tile_c is None:
        tile_c = c if c <= _MAX_TILE_C else _MAX_TILE_C
    if tile_n is None:
        per_row = tile_c * (2 * streamed_bytes + 4 * f32_temps) + _LANE_PAD_ROW_BYTES
        align = max(8, 32 // max(1, min_itemsize))   # 8 f32, 16 bf16, 32 int8/fp8
        tile_n = budget // per_row
        if tile_n >= n:
            tile_n = n
        else:
            tile_n = max(align, (tile_n // align) * align)
            tile_n = min(tile_n, n)
    return vmem_limit, tile_n, tile_c


def _ce_index_kernel(tgt_ref, x_ref, part_ref, m_sc, l_sc, p_sc,
                     *, n, c, tile_n, tile_c):
    # tgt_ref: (tile_n, 1) int32 | x_ref: (tile_n, tile_c) | part_ref: (1, 128) f32
    # scratch: m (run max), l (run exp-sum), p (gathered logit)  — all (tile_n, 1) f32
    i = pl.program_id(0)
    k = pl.program_id(1)
    nk = pl.num_programs(1)

    @pl.when(k == 0)
    def _():
        m_sc[...] = jnp.full_like(m_sc, -jnp.inf)
        l_sc[...] = jnp.zeros_like(l_sc)
        p_sc[...] = jnp.zeros_like(p_sc)

    x = x_ref[...].astype(jnp.float32)
    col = jax.lax.broadcasted_iota(jnp.int32, x.shape, 1) + k * tile_c
    if c % tile_c != 0:                                  # ragged last class chunk
        x = jnp.where(col < c, x, -jnp.inf)

    chunk_max = jnp.max(x, axis=-1, keepdims=True)
    m_old = m_sc[...]
    m_new = jnp.maximum(m_old, chunk_max)
    l_sc[...] = (l_sc[...] * jnp.exp(m_old - m_new)
                 + jnp.sum(jnp.exp(x - m_new), axis=-1, keepdims=True))
    m_sc[...] = m_new

    # Gather x[row, target[row]]: exactly one class chunk contains the match.
    p_sc[...] += jnp.sum(jnp.where(col == tgt_ref[...], x, 0.0),
                         axis=-1, keepdims=True)

    @pl.when(k == nk - 1)
    def _():
        # lse - x[target] = (m - picked) + log(l)
        row_loss = (m_sc[...] - p_sc[...]) + jnp.log(l_sc[...])
        if n % tile_n != 0:                              # mask padded batch rows
            rows = jax.lax.broadcasted_iota(jnp.int32, (tile_n, 1), 0) + i * tile_n
            row_loss = jnp.where(rows < n, row_loss, 0.0)
        part_ref[...] = jnp.broadcast_to(
            jnp.sum(row_loss, axis=0, keepdims=True), (1, 128)).astype(jnp.float32)


def _ce_soft_kernel(tgt_ref, x_ref, part_ref, m_sc, l_sc, t_sc, a_sc,
                    *, n, c, tile_n, tile_c):
    # tgt_ref/x_ref: (tile_n, tile_c) | part_ref: (1, 128) f32
    # scratch: m (run max), l (run exp-sum), T (sum t), A (sum t*(m - x)) — (tile_n, 1) f32
    i = pl.program_id(0)
    k = pl.program_id(1)
    nk = pl.num_programs(1)

    @pl.when(k == 0)
    def _():
        m_sc[...] = jnp.full_like(m_sc, -jnp.inf)
        l_sc[...] = jnp.zeros_like(l_sc)
        t_sc[...] = jnp.zeros_like(t_sc)
        a_sc[...] = jnp.zeros_like(a_sc)

    x = x_ref[...].astype(jnp.float32)
    t = tgt_ref[...].astype(jnp.float32)
    ragged_c = c % tile_c != 0
    if ragged_c:
        col = jax.lax.broadcasted_iota(jnp.int32, x.shape, 1) + k * tile_c
        valid = col < c
        x = jnp.where(valid, x, -jnp.inf)
        t = jnp.where(valid, t, 0.0)

    chunk_max = jnp.max(x, axis=-1, keepdims=True)
    m_old = m_sc[...]
    m_new = jnp.maximum(m_old, chunk_max)

    l_sc[...] = (l_sc[...] * jnp.exp(m_old - m_new)
                 + jnp.sum(jnp.exp(x - m_new), axis=-1, keepdims=True))

    # A accumulates sum_j t_j*(m - x_j) with the running max; rescale old part
    # when m grows (guard the first chunk: T_old == 0 and m_old == -inf).
    rescale = t_sc[...] * jnp.where(m_old == -jnp.inf, 0.0, m_new - m_old)
    contrib = t * (m_new - x)
    if ragged_c:
        contrib = jnp.where(valid, contrib, 0.0)
    a_sc[...] = a_sc[...] + rescale + jnp.sum(contrib, axis=-1, keepdims=True)
    t_sc[...] = t_sc[...] + jnp.sum(t, axis=-1, keepdims=True)
    m_sc[...] = m_new

    @pl.when(k == nk - 1)
    def _():
        # sum_j t*(lse - x) = T*log(l) + sum_j t*(m - x)
        row_loss = t_sc[...] * jnp.log(l_sc[...]) + a_sc[...]
        if n % tile_n != 0:
            rows = jax.lax.broadcasted_iota(jnp.int32, (tile_n, 1), 0) + i * tile_n
            row_loss = jnp.where(rows < n, row_loss, 0.0)
        part_ref[...] = jnp.broadcast_to(
            jnp.sum(row_loss, axis=0, keepdims=True), (1, 128)).astype(jnp.float32)


def cross_entropy_loss(x, target, reduction="mean", *, tile_n=None, tile_c=None):
    n, c = x.shape
    x_bytes = jnp.dtype(x.dtype).itemsize
    index_target = target.ndim == x.ndim - 1

    if index_target:
        tgt = target.astype(jnp.int32).reshape(n, 1)
        streamed = x_bytes                     # only x streamed per class chunk
        f32_temps = 3                          # x_f32, exp, where tmp
        min_item = x_bytes
    else:
        tgt = target
        t_bytes = jnp.dtype(target.dtype).itemsize
        streamed = x_bytes + t_bytes
        f32_temps = 5                          # x_f32, t_f32, exp, contrib, tmp
        min_item = min(x_bytes, t_bytes)

    vmem_limit, tn, tc = _pick_tiles(n, c, streamed, f32_temps, min_item,
                                     tile_n, tile_c)
    assert tc == c or tc % 128 == 0, (tc, c)
    assert tn == n or tn % 8 == 0, (tn, n)

    grid = (pl.cdiv(n, tn), pl.cdiv(c, tc))

    if index_target:
        kern = functools.partial(_ce_index_kernel, n=n, c=c, tile_n=tn, tile_c=tc)
        in_specs = [
            # k-independent index_map -> target block DMA'd once per batch tile.
            pl.BlockSpec((tn, 1), lambda i, k: (i, 0)),
            pl.BlockSpec((tn, tc), lambda i, k: (i, k)),
        ]
        scratch = [pltpu.VMEM((tn, 1), jnp.float32)] * 3
    else:
        kern = functools.partial(_ce_soft_kernel, n=n, c=c, tile_n=tn, tile_c=tc)
        in_specs = [
            pl.BlockSpec((tn, tc), lambda i, k: (i, k)),
            pl.BlockSpec((tn, tc), lambda i, k: (i, k)),
        ]
        scratch = [pltpu.VMEM((tn, 1), jnp.float32)] * 4

    partials = pl.pallas_call(
        kern,
        out_shape=jax.ShapeDtypeStruct((grid[0], 128), jnp.float32),
        grid=grid,
        in_specs=in_specs,
        out_specs=pl.BlockSpec((1, 128), lambda i, k: (i, 0)),
        scratch_shapes=scratch,
        compiler_params=pltpu.CompilerParams(
            dimension_semantics=("parallel", "arbitrary"),
            vmem_limit_bytes=vmem_limit,
        ),
    )(tgt, x)

    loss = jnp.sum(partials[:, 0])
    if reduction == "mean":
        loss = loss / jnp.float32(n)
    return loss


def _ref_loss(x, target, reduction="mean"):
    # pure-JAX reference mirroring the PyTorch module (stable logsumexp form)
    x32 = x.astype(jnp.float32)
    lse = jax.scipy.special.logsumexp(x32, axis=-1, keepdims=True)
    logsm = x32 - lse
    if target.ndim == x.ndim - 1:
        picked = jnp.take_along_axis(logsm, target[:, None].astype(jnp.int32), axis=1)
        loss = -jnp.sum(picked)
    else:
        loss = -jnp.sum(target.astype(jnp.float32) * logsm)
    if reduction == "mean":
        loss = loss / x.shape[0]
    return loss


if __name__ == "__main__":
    key = jax.random.PRNGKey(0)
    k1, k2, k3, k4, k5, k6 = jax.random.split(key, 6)

    # Primary demo shape: batch=8, num_classes=32 (single block; C < 128 is
    # allowed because the block covers the full class dim).
    N, C = 8, 32
    logits = jax.random.normal(k1, (N, C), dtype=jnp.float32)

    # class-index targets
    target_idx = jax.random.randint(k2, (N,), 0, C, dtype=jnp.int32)
    loss_idx = jax.block_until_ready(cross_entropy_loss(logits, target_idx, reduction="mean"))
    assert jnp.allclose(loss_idx, _ref_loss(logits, target_idx), rtol=1e-5, atol=1e-5), (
        loss_idx, _ref_loss(logits, target_idx))

    # soft (probability) targets
    target_soft = jax.nn.softmax(jax.random.normal(k3, (N, C), dtype=jnp.float32), axis=-1)
    loss_soft = jax.block_until_ready(cross_entropy_loss(logits, target_soft, reduction="mean"))
    assert jnp.allclose(loss_soft, _ref_loss(logits, target_soft), rtol=1e-5, atol=1e-5), (
        loss_soft, _ref_loss(logits, target_soft))

    # Multi-tile check exercising BOTH ragged batch tiles (20 % 8 != 0) and
    # ragged class chunks (200 % 128 != 0) with the online-logsumexp path,
    # using larger-magnitude logits for numerical stress.
    N2, C2 = 20, 200
    logits2 = jax.random.normal(k4, (N2, C2), dtype=jnp.float32) * 10.0
    target2 = jax.random.randint(k5, (N2,), 0, C2, dtype=jnp.int32)
    loss2 = jax.block_until_ready(
        cross_entropy_loss(logits2, target2, tile_n=8, tile_c=128))
    assert jnp.allclose(loss2, _ref_loss(logits2, target2), rtol=1e-5, atol=1e-5), (
        loss2, _ref_loss(logits2, target2))

    # Same ragged tiling for the soft-target path.
    target2_soft = jax.nn.softmax(
        jax.random.normal(k6, (N2, C2), dtype=jnp.float32) * 3.0, axis=-1)
    loss2_soft = jax.block_until_ready(
        cross_entropy_loss(logits2, target2_soft, tile_n=8, tile_c=128))
    assert jnp.allclose(loss2_soft, _ref_loss(logits2, target2_soft), rtol=1e-5, atol=1e-5), (
        loss2_soft, _ref_loss(logits2, target2_soft))

    print("KERNEL_OK")
</pallas_src>

<mosaic_0001>
module attributes {stable_mosaic.version = 11 : i64} {
  func.func @_ce_index_kernel(%arg0: i32, %arg1: i32, %arg2: memref<8x1xi32, #tpu.memory_space<vmem>>, %arg3: memref<8x32xf32, #tpu.memory_space<vmem>>, %arg4: memref<1x128xf32, #tpu.memory_space<vmem>>, %arg5: memref<8x1xf32, #tpu.memory_space<vmem>>, %arg6: memref<8x1xf32, #tpu.memory_space<vmem>>, %arg7: memref<8x1xf32, #tpu.memory_space<vmem>>) attributes {dimension_semantics = [#tpu.dimension_semantics<parallel>, #tpu.dimension_semantics<arbitrary>], iteration_bounds = array<i64: 1, 1>, scalar_prefetch = 0 : i64, scratch_operands = 3 : i64, tpu.core_type = #tpu.core_type<tc>, window_params = [{transform_indices = @transform_0, window_bounds = array<i64: 8, 1>}, {transform_indices = @transform_1, window_bounds = array<i64: 8, 32>}, {transform_indices = @transform_2, window_bounds = array<i64: 1, 128>}]} {
    %c0_i32 = arith.constant 0 : i32
    %0 = arith.cmpi eq, %arg1, %c0_i32 : i32
    %1 = arith.extui %0 : i1 to i32
    %c0_i32_0 = arith.constant 0 : i32
    %2 = arith.cmpi ne, %1, %c0_i32_0 : i32
    scf.if %2 {
      %cst_21 = arith.constant 0xFF800000 : f32
      %37 = vector.broadcast %cst_21 : f32 to vector<8x1xf32>
      %c0_22 = arith.constant 0 : index
      %c0_23 = arith.constant 0 : index
      %38 = vector.load %arg5[%c0_22, %c0_23] : memref<8x1xf32, #tpu.memory_space<vmem>>, vector<8x1xf32>
      tpu.vector_store %arg5[%c0_22, %c0_23], %37 {strides = array<i32>} : memref<8x1xf32, #tpu.memory_space<vmem>>, vector<8x1xf32>,
      %cst_24 = arith.constant 0.000000e+00 : f32
      %39 = vector.broadcast %cst_24 : f32 to vector<8x1xf32>
      %c0_25 = arith.constant 0 : index
      %c0_26 = arith.constant 0 : index
      %40 = vector.load %arg6[%c0_25, %c0_26] : memref<8x1xf32, #tpu.memory_space<vmem>>, vector<8x1xf32>
      tpu.vector_store %arg6[%c0_25, %c0_26], %39 {strides = array<i32>} : memref<8x1xf32, #tpu.memory_space<vmem>>, vector<8x1xf32>,
      %cst_27 = arith.constant 0.000000e+00 : f32
      %41 = vector.broadcast %cst_27 : f32 to vector<8x1xf32>
      %c0_28 = arith.constant 0 : index
      %c0_29 = arith.constant 0 : index
      %42 = vector.load %arg7[%c0_28, %c0_29] : memref<8x1xf32, #tpu.memory_space<vmem>>, vector<8x1xf32>
      tpu.vector_store %arg7[%c0_28, %c0_29], %41 {strides = array<i32>} : memref<8x1xf32, #tpu.memory_space<vmem>>, vector<8x1xf32>,
    } else {
    }
    %c0 = arith.constant 0 : index
    %c0_1 = arith.constant 0 : index
    %3 = vector.load %arg3[%c0, %c0_1] : memref<8x32xf32, #tpu.memory_space<vmem>>, vector<8x32xf32>
    %4 = tpu.iota {dimensions = array<i32: 1>} : vector<8x32xi32>
    %c32_i32 = arith.constant 32 : i32
    %5 = arith.muli %arg1, %c32_i32 : i32
    %6 = vector.broadcast %5 : i32 to vector<8x32xi32>
    %7 = arith.addi %4, %6 : vector<8x32xi32>
    %cst = arith.constant dense<0xFF800000> : vector<8xf32>
    %8 = vector.multi_reduction <maximumf>, %3, %cst [1] : vector<8x32xf32> to vector<8xf32>
    %9 = vector.shape_cast %8 : vector<8xf32> to vector<8x1xf32>
    %c0_2 = arith.constant 0 : index
    %c0_3 = arith.constant 0 : index
    %10 = vector.load %arg5[%c0_2, %c0_3] : memref<8x1xf32, #tpu.memory_space<vmem>>, vector<8x1xf32>
    %11 = arith.maximumf %10, %9 : vector<8x1xf32>
    %c0_4 = arith.constant 0 : index
    %c0_5 = arith.constant 0 : index
    %12 = vector.load %arg6[%c0_4, %c0_5] : memref<8x1xf32, #tpu.memory_space<vmem>>, vector<8x1xf32>
    %13 = arith.subf %10, %11 : vector<8x1xf32>
    %14 = math.exp %13 : vector<8x1xf32>
    %15 = arith.mulf %12, %14 : vector<8x1xf32>
    %16 = vector.broadcast %11 : vector<8x1xf32> to vector<8x32xf32>
    %17 = arith.subf %3, %16 : vector<8x32xf32>
    %18 = math.exp %17 : vector<8x32xf32>
    %cst_6 = arith.constant dense<0.000000e+00> : vector<8xf32>
    %19 = vector.multi_reduction <add>, %18, %cst_6 [1] : vector<8x32xf32> to vector<8xf32>
    %20 = vector.shape_cast %19 : vector<8xf32> to vector<8x1xf32>
    %21 = arith.addf %15, %20 : vector<8x1xf32>
    %c0_7 = arith.constant 0 : index
    %c0_8 = arith.constant 0 : index
    %22 = vector.load %arg6[%c0_7, %c0_8] : memref<8x1xf32, #tpu.memory_space<vmem>>, vector<8x1xf32>
    tpu.vector_store %arg6[%c0_7, %c0_8], %21 {strides = array<i32>} : memref<8x1xf32, #tpu.memory_space<vmem>>, vector<8x1xf32>,
    %c0_9 = arith.constant 0 : index
    %c0_10 = arith.constant 0 : index
    %23 = vector.load %arg5[%c0_9, %c0_10] : memref<8x1xf32, #tpu.memory_space<vmem>>, vector<8x1xf32>
    tpu.vector_store %arg5[%c0_9, %c0_10], %11 {strides = array<i32>} : memref<8x1xf32, #tpu.memory_space<vmem>>, vector<8x1xf32>,
    %c0_11 = arith.constant 0 : index
    %c0_12 = arith.constant 0 : index
    %24 = vector.load %arg7[%c0_11, %c0_12] : memref<8x1xf32, #tpu.memory_space<vmem>>, vector<8x1xf32>
    %c0_13 = arith.constant 0 : index
    %c0_14 = arith.constant 0 : index
    %25 = vector.load %arg2[%c0_13, %c0_14] : memref<8x1xi32, #tpu.memory_space<vmem>>, vector<8x1xi32>
    %26 = vector.broadcast %25 : vector<8x1xi32> to vector<8x32xi32>
    %27 = arith.cmpi eq, %7, %26 : vector<8x32xi32>
    %cst_15 = arith.constant 0.000000e+00 : f32
    %28 = vector.broadcast %cst_15 : f32 to vector<8x32xf32>
    %29 = arith.select %27, %3, %28 : vector<8x32xi1>, vector<8x32xf32>
    %cst_16 = arith.constant dense<0.000000e+00> : vector<8xf32>
    %30 = vector.multi_reduction <add>, %29, %cst_16 [1] : vector<8x32xf32> to vector<8xf32>
    %31 = vector.shape_cast %30 : vector<8xf32> to vector<8x1xf32>
    %32 = arith.addf %24, %31 : vector<8x1xf32>
    %c0_17 = arith.constant 0 : index
    %c0_18 = arith.constant 0 : index
    %33 = vector.load %arg7[%c0_17, %c0_18] : memref<8x1xf32, #tpu.memory_space<vmem>>, vector<8x1xf32>
    tpu.vector_store %arg7[%c0_17, %c0_18], %32 {strides = array<i32>} : memref<8x1xf32, #tpu.memory_space<vmem>>, vector<8x1xf32>,
    %c0_i32_19 = arith.constant 0 : i32
    %34 = arith.cmpi eq, %arg1, %c0_i32_19 : i32
    %35 = arith.extui %34 : i1 to i32
    %c0_i32_20 = arith.constant 0 : i32
    %36 = arith.cmpi ne, %35, %c0_i32_20 : i32
    scf.if %36 {
      %c0_21 = arith.constant 0 : index
      %c0_22 = arith.constant 0 : index
      %37 = vector.load %arg5[%c0_21, %c0_22] : memref<8x1xf32, #tpu.memory_space<vmem>>, vector<8x1xf32>
      %c0_23 = arith.constant 0 : index
      %c0_24 = arith.constant 0 : index
      %38 = vector.load %arg7[%c0_23, %c0_24] : memref<8x1xf32, #tpu.memory_space<vmem>>, vector<8x1xf32>
      %39 = arith.subf %37, %38 : vector<8x1xf32>
      %c0_25 = arith.constant 0 : index
      %c0_26 = arith.constant 0 : index
      %40 = vector.load %arg6[%c0_25, %c0_26] : memref<8x1xf32, #tpu.memory_space<vmem>>, vector<8x1xf32>
      %41 = math.log %40 : vector<8x1xf32>
      %42 = arith.addf %39, %41 : vector<8x1xf32>
      %cst_27 = arith.constant dense<0.000000e+00> : vector<1xf32>
      %43 = vector.multi_reduction <add>, %42, %cst_27 [0] : vector<8x1xf32> to vector<1xf32>
      %44 = vector.shape_cast %43 : vector<1xf32> to vector<1x1xf32>
      %45 = vector.shape_cast %44 : vector<1x1xf32> to vector<1x1xf32>
      %46 = vector.broadcast %45 : vector<1x1xf32> to vector<1x128xf32>
      %c0_28 = arith.constant 0 : index
      %c0_29 = arith.constant 0 : index
      %47 = vector.load %arg4[%c0_28, %c0_29] : memref<1x128xf32, #tpu.memory_space<vmem>>, vector<1x128xf32>
      tpu.vector_store %arg4[%c0_28, %c0_29], %46 {strides = array<i32>} : memref<1x128xf32, #tpu.memory_space<vmem>>, vector<1x128xf32>,
    } else {
    }
    return
  }
  func.func @transform_0(%arg0: i32, %arg1: i32) -> (i32, i32) {
    %c0_i32 = arith.constant 0 : i32
    %c0_i32_0 = arith.constant 0 : i32
    return %arg0, %c0_i32 : i32, i32
  }
  func.func @transform_1(%arg0: i32, %arg1: i32) -> (i32, i32) {
    %c0_i32 = arith.constant 0 : i32
    return %arg0, %arg1 : i32, i32
  }
  func.func @transform_2(%arg0: i32, %arg1: i32) -> (i32, i32) {
    %c0_i32 = arith.constant 0 : i32
    %c0_i32_0 = arith.constant 0 : i32
    return %arg0, %c0_i32 : i32, i32
  }
}

</mosaic_0001>

<llo_original>
// kernel: tpu_custom_call.1
$region0: #{tpu_custom_call.1}
  #allocation0 [shape = 'u32[]', space=smem, size = 0x4, offset = 0x4, fixed_abs, tag = 'smem constant byte address 0x4 - core index']
  #allocation1 [shape = 'u32[144,128]{1,0:T(1,128)}', space=vmem, size = 0x12000, scoped, tag = 'internal scratch']
  #allocation2 [shape = 'f32[8,1]{1,0:T(8,128)}', space=vmem, size = 0x1000, scoped, tag = 'scratch operand']
  #allocation3 [shape = 'f32[8,1]{1,0:T(8,128)}', space=vmem, size = 0x1000, scoped, tag = 'scratch operand']
  #allocation4 [shape = 'f32[8,1]{1,0:T(8,128)}', space=vmem, size = 0x1000, scoped, tag = 'scratch operand']
  %s0 = inlined_call_operand.vmem [shape: s32[8,1], index: 0, kind: input, shape index: {}]
  %s1 = inlined_call_operand.vmem [shape: f32[8,32], index: 1, kind: input, shape index: {}]
  %s2 = inlined_call_operand.hbm [shape: f32[1,128], index: 2, kind: output, shape index: {}]
  %s3 = sld [smem:[#allocation0]]
  $region26: #{tpu_custom_call.1} parent=0
    _
  %s5 = ssub.s32 1, %s3
  %s6 = scalar_select 0, %s5, %s3
  $region1: #{tpu_custom_call.1} parent=0
    #allocation5 [shape = 'u8[512]{0}', space=vmem, size = 0x400, scoped, tag = 'output window, operand 0, single buffered']
    #allocation6 [shape = 's32[1]{0}', space=sflag, size = 0x4, scoped, tag = 'scoped memory for tpu_custom_call.1']
    %7 = vsyncpa [#allocation6], 0
    // Predicated region
    $region2: #{tpu_custom_call.1} parent=1 // pred_check
      _
    $region3: #{tpu_custom_call.1} parent=1 // pred_check_branch
      %9 = sbr.rel (0) target = $region5
    $region4: #{tpu_custom_call.1} parent=1 // pred_region
      _
    $region5: #{tpu_custom_call.1} parent=1 // pred_fallthru
      _
    // Predicated region
    $region6: #{tpu_custom_call.1} parent=1 // pred_check
      _
    $region7: #{tpu_custom_call.1} parent=1 // pred_check_branch
      %11 = sbr.rel (0) target = $region9
    $region8: #{tpu_custom_call.1} parent=1 // pred_region
      _
    $region9: #{tpu_custom_call.1} parent=1 // pred_fallthru
      _
    %p12 = scmp.eq.s32.totalorder 0, 0
    // Predicated region
    $region10: #{tpu_custom_call.1} parent=1 // pred_check
      %p13 = pneg %p12
    $region11: #{tpu_custom_call.1} parent=1 // pred_check_branch
      %15 = sbr.rel (%p13) target = $region13
    $region12: #{tpu_custom_call.1} parent=1 // pred_region
      %vm16 = vcmask 7168
      %17 = vst.msk [vmem:[#allocation2] sm:$0xff] %vm16, -inf
      %18 = vst.msk [vmem:[#allocation3] sm:$0xff] %vm16, 0.0
      %19 = vst.msk [vmem:[#allocation4] sm:$0xff] %vm16, 0.0
    $region13: #{tpu_custom_call.1} parent=1 // pred_fallthru
      _
    %v20 = vld [vmem:[%s1] sm:$0xff]
    %v21 = vlaneseq
    %v22 = vand.u32 %v21, 127
    %s23 = smul.u32 0, 32
    %v24 = vstv %s23
    %v25 = vadd.s32 %v22, %v24
    %vm26 = vcmask 261120
    %v27 = vsel %vm26, %v20, -inf
    %28 = vmax.xlane.f32.xlu0 %v27
    %v29 = vpop.xlane.xlu0 %28
    %v30 = vld [vmem:[#allocation2] sm:$0xff]
    %v31 = vmax.f32 %v30, %v29
    %v32 = vld [vmem:[#allocation3] sm:$0xff]
    %v33 = vsub.f32 %v30, %v31
    %v34 = vmul.f32 %v33, 1.442695
    %v35 = vpow.pop %v34
    %v36 = vmul.f32 %v32, %v35
    %38 = vset.pattern.permute.xlu0 0
    %39 = vperm.xlu0 %38, %v31
    %v40 = vpop.permute.xlu0 %39
    %v42 = vsub.f32 %v20, %v40
    %v43 = vmul.f32 %v42, 1.442695
    %v44 = vpow.pop %v43
    %v45 = vsel %vm26, %v44, 0.0
    %46 = vadd.xlane.f32.xlu0 %v45
    %v47 = vpop.xlane.xlu0 %46
    %v48 = vadd.f32 %v36, %v47
    %vm49 = vcmask 7168
    %50 = vst.msk [vmem:[#allocation3] sm:$0xff] %vm49, %v48
    %51 = vst.msk [vmem:[#allocation2] sm:$0xff] %vm49, %v31
    %v52 = vld [vmem:[#allocation4] sm:$0xff]
    %v53 = vld [vmem:[%s0] sm:$0xff]
    %54 = vset.pattern.permute.xlu0 0
    %55 = vperm.xlu0 %54, %v53
    %v56 = vpop.permute.xlu0 %55
    %vm57 = vcmp.eq.s32.totalorder %v25, %v56
    %v58 = vsel %vm57, %v20, 0.0
    %v59 = vsel %vm26, %v58, 0.0
    %60 = vadd.xlane.f32.xlu0 %v59
    %v61 = vpop.xlane.xlu0 %60
    %v62 = vadd.f32 %v52, %v61
    %63 = vst.msk [vmem:[#allocation4] sm:$0xff] %vm49, %v62
    // Predicated region
    $region14: #{tpu_custom_call.1} parent=1 // pred_check
      %p64 = pneg %p12
    $region15: #{tpu_custom_call.1} parent=1 // pred_check_branch
      %66 = sbr.rel (%p64) target = $region17
    $region16: #{tpu_custom_call.1} parent=1 // pred_region
      %v67 = vld [vmem:[#allocation2] sm:$0xff]
      %v68 = vld [vmem:[#allocation4] sm:$0xff]
      %v69 = vsub.f32 %v67, %v68
      %v70 = vld [vmem:[#allocation3] sm:$0xff]
      %v71 = vlog2.pop %v70
      %v72 = vmul.f32 %v71, 0.6931472
      %v73 = vadd.f32 %v69, %v72
      %v74 = vsel %vm49, %v73, 0.0
      %v75 = vrot.slane %v74, 4
      %v76 = vadd.f32 %v74, %v75
      %v77 = vrot.slane %v76, 2
      %v78 = vadd.f32 %v76, %v77
      %v79 = vrot.slane %v78, 1
      %v80 = vadd.f32 %v78, %v79
      %82 = vset.pattern.permute.xlu0 0
      %83 = vperm.xlu0 %82, %v80
      %v84 = vpop.permute.xlu0 %83
      %86 = vst [vmem:[#allocation5] sm:$0x1] %v84
    $region17: #{tpu_custom_call.1} parent=1 // pred_fallthru
      _
    // Predicated region
    $region18: #{tpu_custom_call.1} parent=1 // pred_check
      _
    $region19: #{tpu_custom_call.1} parent=1 // pred_check_branch
      %88 = sbr.rel (0) target = $region21
    $region20: #{tpu_custom_call.1} parent=1 // pred_region
      %s90 = ssub.s32 16, 16
      %91 = vsyncadd [#allocation6], %s90
      %s93 = sshll.u32 [#allocation5], 4
      %s94 = int_to_ptr.vmem [resolvable:$true] %s93
      %96 = dma.vmem_to_hbm [thread:$0]  %s94, 16, %s2, [#allocation6]
    $region21: #{tpu_custom_call.1} parent=1 // pred_fallthru
      _
    // Predicated region
    $region22: #{tpu_custom_call.1} parent=1 // pred_check
      _
    $region23: #{tpu_custom_call.1} parent=1 // pred_check_branch
      %98 = sbr.rel (0) target = $region25
    $region24: #{tpu_custom_call.1} parent=1 // pred_region
      %99 = dma.done [#allocation6], 16
    $region25: #{tpu_custom_call.1} parent=1 // pred_fallthru
      _
    %100 = vsyncpa [#allocation6], 1

</llo_original>
